<compile_context>
chip_gen: v7x
topology: tpu7x:2x2x1
jax: 0.10.0
libtpu: 0.0.40
codegen_flags: <defaults>
</compile_context>

<pallas_src>
from typing import NamedTuple

import jax
import jax.numpy as jnp
from jax.experimental import pallas as pl
from jax.experimental.pallas import tpu as pltpu


# --------------------------------------------------------------------------
# helpers
# --------------------------------------------------------------------------
def _round_up(x, m):
    return ((x + m - 1) // m) * m


def _lane_pad(d):
    return _round_up(d, 128)


def _vmem_capacity_bytes(default=64 * 1024 * 1024):
    """Per-chip VMEM capacity; fallback 64 MiB (safe for v7x)."""
    try:
        info = pltpu.get_tpu_info()
        cap = getattr(info, "vmem_capacity_bytes", None)
        if cap:
            return int(cap)
    except Exception:
        pass
    return default


def _pick_tile(dim, unit, cap, overhead_elems):
    """Pick a tile size (multiple of `unit`, <= cap) minimizing
    padded_dim * (1 + overhead_elems / tile): trades wasted (padded) HBM
    writeback against fixed per-grid-step overhead."""
    cap = max(unit, _round_up(min(cap, _round_up(dim, unit)), unit))
    best_t, best_cost = unit, None
    t = unit
    while t <= cap:
        cost = _round_up(dim, t) * (1.0 + overhead_elems / t)
        if best_cost is None or cost < best_cost - 1e-9:
            best_t, best_cost = t, cost
        t += unit
    return best_t


def _vmem_bytes_xa(tm, tk, f2, in_b):
    """Kernel A (X @ A -> T) per-step VMEM (lane-padded, double-buffered)."""
    f2l = _lane_pad(f2)
    return (2 * tm * tk * in_b        # X (tm, tk) chunk
            + 2 * tk * f2l * in_b     # A (tk, f2) chunk, f2 lane-padded to 128
            + 2 * tm * f2l * in_b     # T output block (resident per i)
            + tm * f2l * 4)           # f32 accumulator scratch


def _vmem_bytes_tb(tm, tn, f2, in_b, out_b):
    """Kernel B (T @ B -> R) per-step VMEM (lane-padded, double-buffered)."""
    f2l = _lane_pad(f2)
    return (2 * tm * f2l * in_b       # T block
            + 2 * f2l * tn * in_b     # B column tile (sublane over-estimated)
            + 2 * tm * tn * out_b)    # output tile


# --------------------------------------------------------------------------
# planning (static tile / padding decisions)
# --------------------------------------------------------------------------
class SVDppPlan(NamedTuple):
    num_users: int
    num_items: int
    f2: int
    tm: int
    tk: int
    tn: int
    u_pad: int
    k_pad: int
    n_pad: int
    compute_dtype: object
    out_dtype: object
    vmem_limit: int


def make_plan(num_users, num_items, n_features, *,
              compute_dtype=jnp.bfloat16, out_dtype=jnp.float32):
    f2 = n_features + 2
    in_b = jnp.dtype(compute_dtype).itemsize
    out_b = jnp.dtype(out_dtype).itemsize

    cap = _vmem_capacity_bytes()
    budget = int(0.75 * cap)          # ~48 MiB on v7x, ~96 MiB on 128-MiB parts

    # user-row tile: multiple of 16 (bf16 sublane packing), <= 256
    tm = _pick_tile(num_users, 16, 256, overhead_elems=64)
    # v7x megacore: keep >= 2 tiles on the "parallel" user axis when possible.
    if num_users >= 32:
        tm = min(tm, _round_up(-(-num_users // 2), 16))
    tm = max(16, tm)

    # contraction (item) tile for X @ A: multiple of 128, <= 4096
    tk = _pick_tile(num_items, 128, 4096, overhead_elems=64)
    while tk > 128 and _vmem_bytes_xa(tm, tk, f2, in_b) > budget:
        tk -= 128

    # output-column tile for T @ B: multiple of 128, <= 2048, lane-dense
    tn = _pick_tile(num_items, 128, 2048, overhead_elems=384)
    while tn > 128 and _vmem_bytes_tb(tm, tn, f2, in_b, out_b) > budget:
        tn -= 128

    u_pad = _round_up(num_users, tm)
    k_pad = _round_up(num_items, tk)
    n_pad = _round_up(num_items, tn)
    return SVDppPlan(num_users, num_items, f2, tm, tk, tn, u_pad, k_pad, n_pad,
                     compute_dtype, out_dtype, budget)


# --------------------------------------------------------------------------
# one-time input preparation (cast + concat + pad, OFF the per-call hot path)
# --------------------------------------------------------------------------
def prepare_inputs(implicit_train_matrix, item_to_nf_w, item_to_nf_bias,
                   nf_to_item_w, plan):
    """Cache the results across forward calls: the kernels are HBM-bound and
    re-casting/padding X per call roughly doubles end-to-end HBM traffic."""
    U, I = implicit_train_matrix.shape
    assert (U, I) == (plan.num_users, plan.num_items)
    cd = plan.compute_dtype

    x = implicit_train_matrix.astype(cd)
    if plan.u_pad != U or plan.k_pad != I:
        x = jnp.pad(x, ((0, plan.u_pad - U), (0, plan.k_pad - I)))

    a = jnp.concatenate([item_to_nf_w, item_to_nf_bias], axis=1).astype(cd)
    if plan.k_pad != I:
        a = jnp.pad(a, ((0, plan.k_pad - I), (0, 0)))

    b = nf_to_item_w.astype(cd)
    if plan.n_pad != I:
        b = jnp.pad(b, ((0, 0), (0, plan.n_pad - I)))

    return x, a, b


# --------------------------------------------------------------------------
# kernels
# --------------------------------------------------------------------------
def _xa_kernel(x_ref, a_ref, t_ref, acc_ref):
    # T[i] = sum_k X[i, k-chunk] @ A[k-chunk], accumulated over the k grid axis
    # in an f32 VMEM scratch; stored (as bf16) only at the last k step.
    @pl.when(pl.program_id(1) == 0)
    def _():
        acc_ref[...] = jnp.zeros_like(acc_ref)

    acc_ref[...] += jnp.dot(x_ref[...], a_ref[...],
                            preferred_element_type=jnp.float32)

    @pl.when(pl.program_id(1) == pl.num_programs(1) - 1)
    def _():
        t_ref[...] = acc_ref[...].astype(t_ref.dtype)


def _tb_kernel(t_ref, b_ref, o_ref):
    # R[i, j] = T[i] @ B[:, j]; f2 is a single block, so no reduction axis.
    o_ref[...] = jnp.dot(t_ref[...], b_ref[...],
                         preferred_element_type=jnp.float32).astype(o_ref.dtype)


# --------------------------------------------------------------------------
# forward builder
# --------------------------------------------------------------------------
def build_forward(plan):
    tm, tk, tn, f2 = plan.tm, plan.tk, plan.tn, plan.f2
    u_pad, k_pad, n_pad = plan.u_pad, plan.k_pad, plan.n_pad
    in_b = jnp.dtype(plan.compute_dtype).itemsize
    out_b = jnp.dtype(plan.out_dtype).itemsize

    xa_cost = pl.CostEstimate(
        flops=2 * u_pad * k_pad * f2,
        transcendentals=0,
        bytes_accessed=(u_pad * k_pad * in_b + (u_pad // tm) * k_pad * f2 * in_b
                        + u_pad * f2 * in_b))
    tb_cost = pl.CostEstimate(
        flops=2 * u_pad * f2 * n_pad,
        transcendentals=0,
        bytes_accessed=((u_pad // tm) * f2 * n_pad * in_b
                        + (n_pad // tn) * u_pad * f2 * in_b
                        + u_pad * n_pad * out_b))

    xa_call = pl.pallas_call(
        _xa_kernel,
        out_shape=jax.ShapeDtypeStruct((u_pad, f2), plan.compute_dtype),
        grid_spec=pltpu.PrefetchScalarGridSpec(
            num_scalar_prefetch=0,
            grid=(u_pad // tm, k_pad // tk),
            in_specs=[
                pl.BlockSpec((tm, tk), lambda i, k: (i, k)),   # X row chunk
                pl.BlockSpec((tk, f2), lambda i, k: (k, 0)),   # A chunk
            ],
            out_specs=pl.BlockSpec((tm, f2), lambda i, k: (i, 0)),  # T row tile
            scratch_shapes=[pltpu.VMEM((tm, f2), jnp.float32)],
        ),
        compiler_params=pltpu.CompilerParams(
            dimension_semantics=("parallel", "arbitrary"),
            vmem_limit_bytes=plan.vmem_limit),
        cost_estimate=xa_cost,
    )

    tb_call = pl.pallas_call(
        _tb_kernel,
        out_shape=jax.ShapeDtypeStruct((u_pad, n_pad), plan.out_dtype),
        grid_spec=pltpu.PrefetchScalarGridSpec(
            num_scalar_prefetch=0,
            grid=(u_pad // tm, n_pad // tn),
            in_specs=[
                pl.BlockSpec((tm, f2), lambda i, j: (i, 0)),   # T row tile
                pl.BlockSpec((f2, tn), lambda i, j: (0, j)),   # B column tile
            ],
            out_specs=pl.BlockSpec((tm, tn), lambda i, j: (i, j)),
        ),
        compiler_params=pltpu.CompilerParams(
            dimension_semantics=("parallel", "parallel"),
            vmem_limit_bytes=plan.vmem_limit),
        cost_estimate=tb_cost,
    )

    def forward(x_pad, a_pad, b_pad):
        t = xa_call(x_pad, a_pad)          # (u_pad, f2), compute_dtype
        r = tb_call(t, b_pad)              # (u_pad, n_pad), out_dtype
        if u_pad != plan.num_users or n_pad != plan.num_items:
            r = r[:plan.num_users, :plan.num_items]
        return r

    return jax.jit(forward)


# --------------------------------------------------------------------------
# demo / correctness check
# --------------------------------------------------------------------------
if __name__ == "__main__":
    num_users = 16
    num_items = 256
    n_features = 30          # n_features + 2 = 32

    key = jax.random.PRNGKey(0)
    kparam, kx = jax.random.split(key)
    k1, k2 = jax.random.split(kparam)

    # Module parameter init (matches the torch __init__).
    item_to_nf_w = 0.01 * jax.random.normal(k1, (num_items, n_features), jnp.float32)
    item_to_nf_bias = jnp.zeros((num_items, 2), jnp.float32)
    nf_to_item_w = 0.01 * jax.random.normal(
        k2, (n_features + 2, num_items), jnp.float32)
    nf_to_item_w = nf_to_item_w.at[n_features, :].set(1.0)

    # implicit interaction matrix (0/1), float32 as in the torch matmul
    implicit_train_matrix = (
        jax.random.uniform(kx, (num_users, num_items)) < 0.1
    ).astype(jnp.float32)

    plan = make_plan(num_users, num_items, n_features)
    # One-time cast/concat/pad -- cached across forward calls.
    x_pad, a_pad, b_pad = jax.block_until_ready(
        prepare_inputs(implicit_train_matrix, item_to_nf_w, item_to_nf_bias,
                       nf_to_item_w, plan))

    forward = build_forward(plan)
    out = jax.block_until_ready(forward(x_pad, a_pad, b_pad))
    assert out.shape == (num_users, num_items)

    # Reference #1: mirrors kernel numerics (bf16 inputs, f32 acc, bf16 T).
    a_full = jnp.concatenate([item_to_nf_w, item_to_nf_bias], axis=1)
    xb = implicit_train_matrix.astype(jnp.bfloat16)
    ab = a_full.astype(jnp.bfloat16)
    bb = nf_to_item_w.astype(jnp.bfloat16)
    t_ref = jnp.dot(xb, ab, preferred_element_type=jnp.float32).astype(jnp.bfloat16)
    ref_q = jnp.dot(t_ref, bb, preferred_element_type=jnp.float32)
    err_q = float(jnp.max(jnp.abs(out - ref_q)))
    assert jnp.allclose(out, ref_q, atol=1e-4, rtol=1e-3), err_q

    # Reference #2: exact f32 module semantics (looser tolerance: the kernel
    # intentionally runs the MXU with bf16 inputs and a bf16 T).
    ref_f32 = (implicit_train_matrix @ a_full) @ nf_to_item_w
    err_f = float(jnp.max(jnp.abs(out - ref_f32)))
    assert jnp.allclose(out, ref_f32, atol=2e-3, rtol=5e-2), err_f

    print("KERNEL_OK")
</pallas_src>

<mosaic_0001>
module attributes {stable_mosaic.version = 11 : i64} {
  func.func @_tb_kernel(%arg0: i32, %arg1: i32, %arg2: memref<16x32xbf16, #tpu.memory_space<vmem>>, %arg3: memref<32x256xbf16, #tpu.memory_space<vmem>>, %arg4: memref<16x256xf32, #tpu.memory_space<vmem>>) attributes {dimension_semantics = [#tpu.dimension_semantics<parallel>, #tpu.dimension_semantics<parallel>], iteration_bounds = array<i64: 1, 1>, scalar_prefetch = 0 : i64, scratch_operands = 0 : i64, tpu.core_type = #tpu.core_type<tc>, window_params = [{transform_indices = @transform_0, window_bounds = array<i64: 16, 32>}, {transform_indices = @transform_1, window_bounds = array<i64: 32, 256>}, {transform_indices = @transform_2, window_bounds = array<i64: 16, 256>}]} {
    %c0 = arith.constant 0 : index
    %c0_0 = arith.constant 0 : index
    %0 = vector.load %arg2[%c0, %c0_0] : memref<16x32xbf16, #tpu.memory_space<vmem>>, vector<16x32xbf16>
    %c0_1 = arith.constant 0 : index
    %c0_2 = arith.constant 0 : index
    %1 = vector.load %arg3[%c0_1, %c0_2] : memref<32x256xbf16, #tpu.memory_space<vmem>>, vector<32x256xbf16>
    %cst = arith.constant dense<0.000000e+00> : vector<16x256xf32>
    %2 = tpu.matmul %0, %1, %cst {dimension_numbers = #tpu.dot_dimension_numbers<[1], [0], [0], [1], [0, 0, 1, 1], [], []>} : vector<16x32xbf16>, vector<32x256xbf16>, vector<16x256xf32> -> vector<16x256xf32>
    %c0_3 = arith.constant 0 : index
    %c0_4 = arith.constant 0 : index
    %3 = vector.load %arg4[%c0_3, %c0_4] : memref<16x256xf32, #tpu.memory_space<vmem>>, vector<16x256xf32>
    tpu.vector_store %arg4[%c0_3, %c0_4], %2 {strides = array<i32>} : memref<16x256xf32, #tpu.memory_space<vmem>>, vector<16x256xf32>,
    return
  }
  func.func @transform_0(%arg0: i32, %arg1: i32) -> (i32, i32) {
    %c0_i32 = arith.constant 0 : i32
    %c0_i32_0 = arith.constant 0 : i32
    return %arg0, %c0_i32 : i32, i32
  }
  func.func @transform_1(%arg0: i32, %arg1: i32) -> (i32, i32) {
    %c0_i32 = arith.constant 0 : i32
    %c0_i32_0 = arith.constant 0 : i32
    return %c0_i32, %arg1 : i32, i32
  }
  func.func @transform_2(%arg0: i32, %arg1: i32) -> (i32, i32) {
    %c0_i32 = arith.constant 0 : i32
    return %arg0, %arg1 : i32, i32
  }
}

module attributes {stable_mosaic.version = 11 : i64} {
  func.func @_xa_kernel(%arg0: i32, %arg1: i32, %arg2: memref<16x256xbf16, #tpu.memory_space<vmem>>, %arg3: memref<256x32xbf16, #tpu.memory_space<vmem>>, %arg4: memref<16x32xbf16, #tpu.memory_space<vmem>>, %arg5: memref<16x32xf32, #tpu.memory_space<vmem>>) attributes {dimension_semantics = [#tpu.dimension_semantics<parallel>, #tpu.dimension_semantics<arbitrary>], iteration_bounds = array<i64: 1, 1>, scalar_prefetch = 0 : i64, scratch_operands = 1 : i64, tpu.core_type = #tpu.core_type<tc>, window_params = [{transform_indices = @transform_0, window_bounds = array<i64: 16, 256>}, {transform_indices = @transform_1, window_bounds = array<i64: 256, 32>}, {transform_indices = @transform_2, window_bounds = array<i64: 16, 32>}]} {
    %c0_i32 = arith.constant 0 : i32
    %0 = arith.cmpi eq, %arg1, %c0_i32 : i32
    %1 = arith.extui %0 : i1 to i32
    %c0_i32_0 = arith.constant 0 : i32
    %2 = arith.cmpi ne, %1, %c0_i32_0 : i32
    scf.if %2 {
      %cst_10 = arith.constant 0.000000e+00 : f32
      %12 = vector.broadcast %cst_10 : f32 to vector<16x32xf32>
      %c0_11 = arith.constant 0 : index
      %c0_12 = arith.constant 0 : index
      %13 = vector.load %arg5[%c0_11, %c0_12] : memref<16x32xf32, #tpu.memory_space<vmem>>, vector<16x32xf32>
      tpu.vector_store %arg5[%c0_11, %c0_12], %12 {strides = array<i32>} : memref<16x32xf32, #tpu.memory_space<vmem>>, vector<16x32xf32>,
    } else {
    }
    %c0 = arith.constant 0 : index
    %c0_1 = arith.constant 0 : index
    %3 = vector.load %arg5[%c0, %c0_1] : memref<16x32xf32, #tpu.memory_space<vmem>>, vector<16x32xf32>
    %c0_2 = arith.constant 0 : index
    %c0_3 = arith.constant 0 : index
    %4 = vector.load %arg2[%c0_2, %c0_3] : memref<16x256xbf16, #tpu.memory_space<vmem>>, vector<16x256xbf16>
    %c0_4 = arith.constant 0 : index
    %c0_5 = arith.constant 0 : index
    %5 = vector.load %arg3[%c0_4, %c0_5] : memref<256x32xbf16, #tpu.memory_space<vmem>>, vector<256x32xbf16>
    %cst = arith.constant dense<0.000000e+00> : vector<16x32xf32>
    %6 = tpu.matmul %4, %5, %cst {dimension_numbers = #tpu.dot_dimension_numbers<[1], [0], [0], [1], [0, 0, 1, 1], [], []>} : vector<16x256xbf16>, vector<256x32xbf16>, vector<16x32xf32> -> vector<16x32xf32>
    %7 = arith.addf %3, %6 : vector<16x32xf32>
    %c0_6 = arith.constant 0 : index
    %c0_7 = arith.constant 0 : index
    %8 = vector.load %arg5[%c0_6, %c0_7] : memref<16x32xf32, #tpu.memory_space<vmem>>, vector<16x32xf32>
    tpu.vector_store %arg5[%c0_6, %c0_7], %7 {strides = array<i32>} : memref<16x32xf32, #tpu.memory_space<vmem>>, vector<16x32xf32>,
    %c0_i32_8 = arith.constant 0 : i32
    %9 = arith.cmpi eq, %arg1, %c0_i32_8 : i32
    %10 = arith.extui %9 : i1 to i32
    %c0_i32_9 = arith.constant 0 : i32
    %11 = arith.cmpi ne, %10, %c0_i32_9 : i32
    scf.if %11 {
      %c0_10 = arith.constant 0 : index
      %c0_11 = arith.constant 0 : index
      %12 = vector.load %arg5[%c0_10, %c0_11] : memref<16x32xf32, #tpu.memory_space<vmem>>, vector<16x32xf32>
      %13 = arith.truncf %12 : vector<16x32xf32> to vector<16x32xbf16>
      %c0_12 = arith.constant 0 : index
      %c0_13 = arith.constant 0 : index
      %14 = vector.load %arg4[%c0_12, %c0_13] : memref<16x32xbf16, #tpu.memory_space<vmem>>, vector<16x32xbf16>
      tpu.vector_store %arg4[%c0_12, %c0_13], %13 {strides = array<i32>} : memref<16x32xbf16, #tpu.memory_space<vmem>>, vector<16x32xbf16>,
    } else {
    }
    return
  }
  func.func @transform_0(%arg0: i32, %arg1: i32) -> (i32, i32) {
    %c0_i32 = arith.constant 0 : i32
    return %arg0, %arg1 : i32, i32
  }
  func.func @transform_1(%arg0: i32, %arg1: i32) -> (i32, i32) {
    %c0_i32 = arith.constant 0 : i32
    %c0_i32_0 = arith.constant 0 : i32
    return %arg1, %c0_i32 : i32, i32
  }
  func.func @transform_2(%arg0: i32, %arg1: i32) -> (i32, i32) {
    %c0_i32 = arith.constant 0 : i32
    %c0_i32_0 = arith.constant 0 : i32
    return %arg0, %c0_i32 : i32, i32
  }
}

</mosaic_0001>

<llo_original>
// kernel: forward.3
$region0: #{forward.3}
  #allocation0 [shape = 'u32[]', space=smem, size = 0x4, offset = 0x4, fixed_abs, tag = 'smem constant byte address 0x4 - core index']
  #allocation1 [shape = 'u32[144,128]{1,0:T(1,128)}', space=vmem, size = 0x12000, scoped, tag = 'internal scratch']
  %s0 = inlined_call_operand.vmem [shape: bf16[16,32], index: 0, kind: input, shape index: {}]
  %s1 = inlined_call_operand.vmem [shape: bf16[32,256], index: 1, kind: input, shape index: {}]
  %s2 = inlined_call_operand.hbm [shape: f32[16,256], index: 2, kind: output, shape index: {}]
  %s3 = sld [smem:[#allocation0]]
  $region18: #{forward.3} parent=0
    _
  %s5 = ssub.s32 1, %s3
  %s6 = scalar_select 0, %s5, %s3
  $region1: #{forward.3} parent=0
    #allocation2 [shape = 'u8[16384]{0}', space=vmem, size = 0x4000, scoped, tag = 'output window, operand 0, single buffered']
    #allocation3 [shape = 's32[1]{0}', space=sflag, size = 0x4, scoped, tag = 'scoped memory for forward.3']
    %7 = vsyncpa [#allocation3], 0
    // Predicated region
    $region2: #{forward.3} parent=1 // pred_check
      _
    $region3: #{forward.3} parent=1 // pred_check_branch
      %9 = sbr.rel (0) target = $region5
    $region4: #{forward.3} parent=1 // pred_region
      _
    $region5: #{forward.3} parent=1 // pred_fallthru
      _
    // Predicated region
    $region6: #{forward.3} parent=1 // pred_check
      _
    $region7: #{forward.3} parent=1 // pred_check_branch
      %11 = sbr.rel (0) target = $region9
    $region8: #{forward.3} parent=1 // pred_region
      _
    $region9: #{forward.3} parent=1 // pred_fallthru
      _
    %v13 = vld [vmem:[%s0] sm:$0xf]
    %v14 = vld [vmem:[%s0 + $0x4] sm:$0xf]
    %v15 = vld [vmem:[%s1] sm:$0xff]
    %v16 = vld [vmem:[%s1 + $0x8] sm:$0xff]
    %v17 = vld [vmem:[%s1 + $0x10] sm:$0xff]
    %v18 = vld [vmem:[%s1 + $0x18] sm:$0xff]
    %v21 = vunpack.c.l.b16 %v13
    %v22 = vunpack.c.l.b16 %v14
    %v23 = vpack.c.b16 %v22, %v21
    %v28 = vunpack.c.l.b16 %v15
    %v29 = vunpack.c.h.b16 %v15
    %v30 = vunpack.c.l.b16 %v16
    %v31 = vunpack.c.h.b16 %v16
    %v32 = vunpack.c.l.b16 %v17
    %v33 = vunpack.c.h.b16 %v17
    %v34 = vunpack.c.l.b16 %v18
    %v35 = vunpack.c.h.b16 %v18
    %v36 = vpack.c.b16 %v30, %v28
    %v37 = vpack.c.b16 %v31, %v29
    %v38 = vpack.c.b16 %v34, %v32
    %v39 = vpack.c.b16 %v35, %v33
    %vm44 = vcmask 261120
    %v46 = vsel %vm44, %v23, 0
    %48 = vmatprep.subr.bf16.mxu0 %v37
    %49 = vmatpush1.bf16.msra.mxu0 %v36
    %50 = vmatprep.subr.bf16.mxu0 %v39
    %51 = vmatpush1.bf16.msra.mxu0 %v38
    %52 = vmatprep.subr.bf16.mxu0 0
    %53 = vmatpush1.bf16.msra.mxu0 0
    %54 = vmatprep.subr.bf16.mxu0 0
    %55 = vmatpush1.bf16.msra.mxu0 0
    %56 = vmatprep.subr.bf16.mxu0 0
    %57 = vmatpush1.bf16.msra.mxu0 0
    %58 = vmatprep.subr.bf16.mxu0 0
    %59 = vmatpush1.bf16.msra.mxu0 0
    %60 = vmatprep.subr.bf16.mxu0 0
    %61 = vmatpush1.bf16.msra.mxu0 0
    %62 = vmatprep.subr.bf16.mxu0 0
    %63 = vmatpush1.bf16.msra.mxu0 0
    %64 = vmatprep.subr.bf16.mxu0 0
    %65 = vmatpush1.bf16.msra.mxu0 0
    %66 = vmatprep.subr.bf16.mxu0 0
    %67 = vmatpush1.bf16.msra.mxu0 0
    %68 = vmatprep.subr.bf16.mxu0 0
    %69 = vmatpush1.bf16.msra.mxu0 0
    %70 = vmatprep.subr.bf16.mxu0 0
    %71 = vmatpush1.bf16.msra.mxu0 0
    %72 = vmatprep.subr.bf16.mxu0 0
    %73 = vmatpush1.bf16.msra.mxu0 0
    %74 = vmatprep.subr.bf16.mxu0 0
    %75 = vmatpush1.bf16.msra.mxu0 0
    %76 = vmatprep.subr.bf16.mxu0 0
    %77 = vmatpush1.bf16.msra.mxu0 0
    %78 = vmatprep.subr.bf16.mxu0 0
    %79 = vmatpush1.bf16.msra.mxu0 0
    %80 = vmatprep.mubr.bf16.mxu0 0
    %81 = vmatmul.mubr.bf16.gmra.mrb[0].mxu0 %v46
    %v82 = vpop.f32.mrb[0].mxu0
    %v83 = vadd.f32 0.0, %v82
    %v84 = vpop.f32.mrb[0].mxu0
    %v85 = vadd.f32 0.0, %v84
    %v86 = vpop.f32.mrb[0].mxu0
    %v87 = vadd.f32 0.0, %v86
    %v88 = vpop.f32.mrb[0].mxu0
    %v89 = vadd.f32 0.0, %v88
    %90 = vdwg.mxu0
    %91 = vst [vmem:[#allocation2] sm:$0xff] %v83
    %92 = vst [vmem:[#allocation2 + $0x8] sm:$0xff] %v85
    %93 = vst [vmem:[#allocation2 + $0x10] sm:$0xff] %v87
    %94 = vst [vmem:[#allocation2 + $0x18] sm:$0xff] %v89
    // Predicated region
    $region10: #{forward.3} parent=1 // pred_check
      _
    $region11: #{forward.3} parent=1 // pred_check_branch
      %96 = sbr.rel (0) target = $region13
    $region12: #{forward.3} parent=1 // pred_region
      %s98 = ssub.s32 512, 512
      %99 = vsyncadd [#allocation3], %s98
      %s100 = sshll.u32 [#allocation2], 4
      %s101 = int_to_ptr.vmem [resolvable:$true] %s100
      %106 = dma.vmem_to_hbm [thread:$0]  %s101, 512, %s2, [#allocation3], 256, 256, 16
    $region13: #{forward.3} parent=1 // pred_fallthru
      _
    // Predicated region
    $region14: #{forward.3} parent=1 // pred_check
      _
    $region15: #{forward.3} parent=1 // pred_check_branch
      %108 = sbr.rel (0) target = $region17
    $region16: #{forward.3} parent=1 // pred_region
      %109 = dma.done [#allocation3], 512
    $region17: #{forward.3} parent=1 // pred_fallthru
      _
    %110 = vsyncpa [#allocation3], 1

// kernel: forward.2
$region0: #{forward.2}
  #allocation0 [shape = 'u32[]', space=smem, size = 0x4, offset = 0x4, fixed_abs, tag = 'smem constant byte address 0x4 - core index']
  #allocation1 [shape = 'u32[144,128]{1,0:T(1,128)}', space=vmem, size = 0x12000, scoped, tag = 'internal scratch']
  #allocation2 [shape = 'f32[16,32]{1,0:T(8,128)}', space=vmem, size = 0x2000, scoped, tag = 'scratch operand']
  %s0 = inlined_call_operand.vmem [shape: bf16[16,256], index: 0, kind: input, shape index: {}]
  %s1 = inlined_call_operand.vmem [shape: bf16[256,32], index: 1, kind: input, shape index: {}]
  %s2 = inlined_call_operand.vmem [shape: bf16[16,32], index: 2, kind: output, shape index: {}]
  %s3 = sld [smem:[#allocation0]]
  $region26: #{forward.2} parent=0
    _
  %s5 = ssub.s32 1, %s3
  %s6 = scalar_select 0, %s5, %s3
  // Predicated region
  $region2: #{forward.2} parent=0 // pred_check
    _
  $region3: #{forward.2} parent=0 // pred_check_branch
    %8 = sbr.rel (0) target = $region5
  $region4: #{forward.2} parent=0 // pred_region
    _
  $region5: #{forward.2} parent=0 // pred_fallthru
    _
  // Predicated region
  $region6: #{forward.2} parent=0 // pred_check
    _
  $region7: #{forward.2} parent=0 // pred_check_branch
    %10 = sbr.rel (0) target = $region9
  $region8: #{forward.2} parent=0 // pred_region
    _
  $region9: #{forward.2} parent=0 // pred_fallthru
    _
  %p12 = scmp.eq.s32.totalorder 0, 0
  // Predicated region
  $region10: #{forward.2} parent=0 // pred_check
    %p13 = pneg %p12
  $region11: #{forward.2} parent=0 // pred_check_branch
    %15 = sbr.rel (%p13) target = $region13
  $region12: #{forward.2} parent=0 // pred_region
    %vm16 = vcmask 261120
    %17 = vst.msk [vmem:[#allocation2] sm:$0xff] %vm16, 0.0
    %18 = vst.msk [vmem:[#allocation2 + $0x8] sm:$0xff] %vm16, 0.0
  $region13: #{forward.2} parent=0 // pred_fallthru
    _
  %v19 = vld [vmem:[#allocation2] sm:$0xff]
  %v20 = vld [vmem:[#allocation2 + $0x8] sm:$0xff]
  %v21 = vld [vmem:[%s0] sm:$0xff]
  %v22 = vld [vmem:[%s0 + $0x8] sm:$0xff]
  %v23 = vld [vmem:[%s1] sm:$0xf]
  %v24 = vld [vmem:[%s1 + $0x4] sm:$0xf]
  %v25 = vld [vmem:[%s1 + $0x8] sm:$0xf]
  %v26 = vld [vmem:[%s1 + $0xc] sm:$0xf]
  %v27 = vld [vmem:[%s1 + $0x10] sm:$0xf]
  %v28 = vld [vmem:[%s1 + $0x14] sm:$0xf]
  %v29 = vld [vmem:[%s1 + $0x18] sm:$0xf]
  %v30 = vld [vmem:[%s1 + $0x1c] sm:$0xf]
  %v31 = vld [vmem:[%s1 + $0x20] sm:$0xf]
  %v32 = vld [vmem:[%s1 + $0x24] sm:$0xf]
  %v33 = vld [vmem:[%s1 + $0x28] sm:$0xf]
  %v34 = vld [vmem:[%s1 + $0x2c] sm:$0xf]
  %v35 = vld [vmem:[%s1 + $0x30] sm:$0xf]
  %v36 = vld [vmem:[%s1 + $0x34] sm:$0xf]
  %v37 = vld [vmem:[%s1 + $0x38] sm:$0xf]
  %v38 = vld [vmem:[%s1 + $0x3c] sm:$0xf]
  %v39 = vld [vmem:[%s1 + $0x40] sm:$0xf]
  %v40 = vld [vmem:[%s1 + $0x44] sm:$0xf]
  %v41 = vld [vmem:[%s1 + $0x48] sm:$0xf]
  %v42 = vld [vmem:[%s1 + $0x4c] sm:$0xf]
  %v43 = vld [vmem:[%s1 + $0x50] sm:$0xf]
  %v44 = vld [vmem:[%s1 + $0x54] sm:$0xf]
  %v45 = vld [vmem:[%s1 + $0x58] sm:$0xf]
  %v46 = vld [vmem:[%s1 + $0x5c] sm:$0xf]
  %v47 = vld [vmem:[%s1 + $0x60] sm:$0xf]
  %v48 = vld [vmem:[%s1 + $0x64] sm:$0xf]
  %v49 = vld [vmem:[%s1 + $0x68] sm:$0xf]
  %v50 = vld [vmem:[%s1 + $0x6c] sm:$0xf]
  %v51 = vld [vmem:[%s1 + $0x70] sm:$0xf]
  %v52 = vld [vmem:[%s1 + $0x74] sm:$0xf]
  %v53 = vld [vmem:[%s1 + $0x78] sm:$0xf]
  %v54 = vld [vmem:[%s1 + $0x7c] sm:$0xf]
  %v57 = vunpack.c.l.b16 %v21
  %v58 = vunpack.c.h.b16 %v21
  %v59 = vunpack.c.l.b16 %v22
  %v60 = vunpack.c.h.b16 %v22
  %v61 = vpack.c.b16 %v59, %v57
  %v62 = vpack.c.b16 %v60, %v58
  %v97 = vunpack.c.l.b16 %v23
  %v98 = vunpack.c.l.b16 %v24
  %v99 = vunpack.c.l.b16 %v25
  %v100 = vunpack.c.l.b16 %v26
  %v101 = vunpack.c.l.b16 %v27
  %v102 = vunpack.c.l.b16 %v28
  %v103 = vunpack.c.l.b16 %v29
  %v104 = vunpack.c.l.b16 %v30
  %v105 = vunpack.c.l.b16 %v31
  %v106 = vunpack.c.l.b16 %v32
  %v107 = vunpack.c.l.b16 %v33
  %v108 = vunpack.c.l.b16 %v34
  %v109 = vunpack.c.l.b16 %v35
  %v110 = vunpack.c.l.b16 %v36
  %v111 = vunpack.c.l.b16 %v37
  %v112 = vunpack.c.l.b16 %v38
  %v113 = vunpack.c.l.b16 %v39
  %v114 = vunpack.c.l.b16 %v40
  %v115 = vunpack.c.l.b16 %v41
  %v116 = vunpack.c.l.b16 %v42
  %v117 = vunpack.c.l.b16 %v43
  %v118 = vunpack.c.l.b16 %v44
  %v119 = vunpack.c.l.b16 %v45
  %v120 = vunpack.c.l.b16 %v46
  %v121 = vunpack.c.l.b16 %v47
  %v122 = vunpack.c.l.b16 %v48
  %v123 = vunpack.c.l.b16 %v49
  %v124 = vunpack.c.l.b16 %v50
  %v125 = vunpack.c.l.b16 %v51
  %v126 = vunpack.c.l.b16 %v52
  %v127 = vunpack.c.l.b16 %v53
  %v128 = vunpack.c.l.b16 %v54
  %v129 = vpack.c.b16 %v98, %v97
  %v130 = vpack.c.b16 %v100, %v99
  %v131 = vpack.c.b16 %v102, %v101
  %v132 = vpack.c.b16 %v104, %v103
  %v133 = vpack.c.b16 %v106, %v105
  %v134 = vpack.c.b16 %v108, %v107
  %v135 = vpack.c.b16 %v110, %v109
  %v136 = vpack.c.b16 %v112, %v111
  %v137 = vpack.c.b16 %v114, %v113
  %v138 = vpack.c.b16 %v116, %v115
  %v139 = vpack.c.b16 %v118, %v117
  %v140 = vpack.c.b16 %v120, %v119
  %v141 = vpack.c.b16 %v122, %v121
  %v142 = vpack.c.b16 %v124, %v123
  %v143 = vpack.c.b16 %v126, %v125
  %v144 = vpack.c.b16 %v128, %v127
  %161 = vmatprep.subr.bf16.mxu0 0
  %162 = vmatpush1.bf16.msra.mxu0 %v129
  %163 = vmatprep.subr.bf16.mxu0 0
  %164 = vmatpush1.bf16.msra.mxu0 %v130
  %165 = vmatprep.subr.bf16.mxu0 0
  %166 = vmatpush1.bf16.msra.mxu0 %v131
  %167 = vmatprep.subr.bf16.mxu0 0
  %168 = vmatpush1.bf16.msra.mxu0 %v132
  %169 = vmatprep.subr.bf16.mxu0 0
  %170 = vmatpush1.bf16.msra.mxu0 %v133
  %171 = vmatprep.subr.bf16.mxu0 0
  %172 = vmatpush1.bf16.msra.mxu0 %v134
  %173 = vmatprep.subr.bf16.mxu0 0
  %174 = vmatpush1.bf16.msra.mxu0 %v135
  %175 = vmatprep.subr.bf16.mxu0 0
  %176 = vmatpush1.bf16.msra.mxu0 %v136
  %177 = vmatprep.subr.bf16.mxu0 0
  %178 = vmatpush1.bf16.msra.mxu0 %v137
  %179 = vmatprep.subr.bf16.mxu0 0
  %180 = vmatpush1.bf16.msra.mxu0 %v138
  %181 = vmatprep.subr.bf16.mxu0 0
  %182 = vmatpush1.bf16.msra.mxu0 %v139
  %183 = vmatprep.subr.bf16.mxu0 0
  %184 = vmatpush1.bf16.msra.mxu0 %v140
  %185 = vmatprep.subr.bf16.mxu0 0
  %186 = vmatpush1.bf16.msra.mxu0 %v141
  %187 = vmatprep.subr.bf16.mxu0 0
  %188 = vmatpush1.bf16.msra.mxu0 %v142
  %189 = vmatprep.subr.bf16.mxu0 0
  %190 = vmatpush1.bf16.msra.mxu0 %v143
  %191 = vmatprep.subr.bf16.mxu0 0
  %192 = vmatpush1.bf16.msra.mxu0 %v144
  %193 = vmatprep.mubr.bf16.mxu0 %v62
  %194 = vmatmul.mubr.bf16.gmra.mrb[0].mxu0 %v61
  %v195 = vpop.f32.mrb[0].mxu0
  %v196 = vadd.f32 0.0, %v195
  %v197 = vpop.f32.mrb[0].mxu0
  %v198 = vpop.f32.mrb[0].mxu0
  %v199 = vadd.f32 0.0, %v198
  %v200 = vpop.f32.mrb[0].mxu0
  %201 = vdwg.mxu0
  %v202 = vadd.f32 %v19, %v196
  %v203 = vadd.f32 %v20, %v199
  %vm204 = vcmask 261120
  %205 = vst.msk [vmem:[#allocation2] sm:$0xff] %vm204, %v202
  %206 = vst.msk [vmem:[#allocation2 + $0x8] sm:$0xff] %vm204, %v203
  // Predicated region
  $region14: #{forward.2} parent=0 // pred_check
    %p207 = pneg %p12
  $region15: #{forward.2} parent=0 // pred_check_branch
    %209 = sbr.rel (%p207) target = $region17
  $region16: #{forward.2} parent=0 // pred_region
    %v210 = vld [vmem:[#allocation2] sm:$0xff]
    %v211 = vld [vmem:[#allocation2 + $0x8] sm:$0xff]
    %v212 = vpack.c.bf16 %v211, %v210
    %v214 = vunpack.c.l.b16 %v212
    %v215 = vunpack.c.h.b16 %v212
    %v216 = vpack.c.b16 %v214, %v214
    %v217 = vpack.c.b16 %v215, %v215
    %vm220 = vcmask 257024
    %221 = vst.msk [vmem:[%s2] sm:$0xf] %vm220, %v216
    %222 = vst.msk [vmem:[%s2 + $0x4] sm:$0xf] %vm220, %v217
  $region17: #{forward.2} parent=0 // pred_fallthru
    _
  // Predicated region
  $region18: #{forward.2} parent=0 // pred_check
    _
  $region19: #{forward.2} parent=0 // pred_check_branch
    %224 = sbr.rel (0) target = $region21
  $region20: #{forward.2} parent=0 // pred_region
    _
  $region21: #{forward.2} parent=0 // pred_fallthru
    _
  // Predicated region
  $region22: #{forward.2} parent=0 // pred_check
    _
  $region23: #{forward.2} parent=0 // pred_check_branch
    %226 = sbr.rel (0) target = $region25
  $region24: #{forward.2} parent=0 // pred_region
    _
  $region25: #{forward.2} parent=0 // pred_fallthru
    _

</llo_original>
